<compile_context>
chip_gen: v7x
topology: tpu7x:2x2x1
jax: 0.10.0
libtpu: 0.0.40
codegen_flags: <defaults>
</compile_context>

<pallas_src>
import jax
import jax.numpy as jnp
from jax.experimental import pallas as pl
from jax.experimental.pallas import tpu as pltpu


LANE = 128                              # TPU vreg lane width
_TARGET_BLOCK_BYTES = 4 * 1024 * 1024   # ~4 MiB/block; 2 bufs x (in+out) = 16 MiB
_VMEM_LIMIT_BYTES = 32 * 1024 * 1024    # explicit so v5e (16 MiB default) accepts it


def _sublane_min(dtype) -> int:
    """Minimum second-to-last tile dim for this dtype (f32:8, bf16:16, int8:32)."""
    itemsize = jnp.dtype(dtype).itemsize
    return {4: 8, 2: 16, 1: 32}.get(itemsize, 8)


def _copy_kernel(x_ref, o_ref):
    # Pure identity copy — a contiguous .view() does not permute elements.
    o_ref[...] = x_ref[...]


def _identity_copy_2d(slab):
    """Stream a (rows, width) lane-dense slab through VMEM unchanged."""
    rows, width = slab.shape
    itemsize = jnp.dtype(slab.dtype).itemsize
    sub = _sublane_min(slab.dtype)

    # Biggest block that respects the dtype's sublane minimum and the VMEM budget.
    tile_rows = max(sub, (_TARGET_BLOCK_BYTES // (width * itemsize)) // sub * sub)
    rows_rounded = ((rows + sub - 1) // sub) * sub
    tile_rows = min(tile_rows, rows_rounded)

    grid = (pl.cdiv(rows, tile_rows),)   # ragged last block handled by Pallas
    n_bytes = rows * width * itemsize

    return pl.pallas_call(
        _copy_kernel,
        out_shape=jax.ShapeDtypeStruct((rows, width), slab.dtype),
        grid_spec=pltpu.PrefetchScalarGridSpec(
            num_scalar_prefetch=0,
            grid=grid,
            in_specs=[pl.BlockSpec((tile_rows, width), lambda i: (i, 0))],
            out_specs=pl.BlockSpec((tile_rows, width), lambda i: (i, 0)),
        ),
        compiler_params=pltpu.CompilerParams(
            dimension_semantics=("parallel",),      # megacore-shardable on v7x
            vmem_limit_bytes=_VMEM_LIMIT_BYTES,
        ),
        cost_estimate=pl.CostEstimate(
            flops=0, transcendentals=0, bytes_accessed=2 * n_bytes),
    )(slab)


def make_intro_reshape(*shape):
    """Return a callable implementing IntroReshape(*shape).forward via Pallas."""

    def apply(x):
        n = x.size
        out_shape = (-1,) + tuple(int(s) for s in shape)
        sub = _sublane_min(x.dtype)

        flat = x.reshape(-1)  # metadata-only for contiguous data

        # Pick the widest lane-dense slab layout that divides n exactly.
        width = None
        for w in (8 * LANE, 4 * LANE, 2 * LANE, LANE):
            if n % w == 0 and (n // w) % sub == 0:
                width = w
                break

        if width is not None:
            # Fast path: no padding, no post-slice — single HBM read + write.
            slab = flat.reshape(n // width, width)
            out_slab = _identity_copy_2d(slab)
            return out_slab.reshape(out_shape)

        # Ragged fallback: pad to a (sub, 128)-aligned slab, copy, drop the tail.
        # Zero padding is always safe here (identity copy; tail is discarded).
        # TODO(synk): handle the ragged tail in-kernel (cdiv grid + masked store
        # on a 1-D view) to avoid the extra pad/slice HBM round trips.
        pad_unit = sub * LANE
        pad_to = ((n + pad_unit - 1) // pad_unit) * pad_unit
        padded = jnp.pad(flat, (0, pad_to - n))
        slab = padded.reshape(pad_to // LANE, LANE)
        out_slab = _identity_copy_2d(slab)
        return out_slab.reshape(-1)[:n].reshape(out_shape)

    return apply


if __name__ == "__main__":
    key = jax.random.PRNGKey(0)
    x = jax.random.normal(key, (2, 4, 16, 16), dtype=jnp.float32)  # NCHW

    # IntroReshape(16, 16): x.view(-1, 16, 16) -> (8, 16, 16)
    intro_reshape = make_intro_reshape(16, 16)
    y = jax.block_until_ready(intro_reshape(x))
    y_ref = x.reshape(-1, 16, 16)
    assert y.shape == y_ref.shape and y.dtype == x.dtype
    assert jnp.array_equal(y, y_ref)

    # IntroReshape(4, 8, 8): x.view(-1, 4, 8, 8) -> (8, 4, 8, 8)
    intro_reshape2 = make_intro_reshape(4, 8, 8)
    y2 = jax.block_until_ready(intro_reshape2(x))
    assert jnp.array_equal(y2, x.reshape(-1, 4, 8, 8))

    print("KERNEL_OK")
</pallas_src>

<mosaic_0001>
module attributes {stable_mosaic.version = 11 : i64} {
  func.func @_copy_kernel(%arg0: i32, %arg1: memref<8x256xf32, #tpu.memory_space<vmem>>, %arg2: memref<8x256xf32, #tpu.memory_space<vmem>>) attributes {dimension_semantics = [#tpu.dimension_semantics<parallel>], iteration_bounds = array<i64: 1>, scalar_prefetch = 0 : i64, scratch_operands = 0 : i64, tpu.core_type = #tpu.core_type<tc>, window_params = [{transform_indices = @transform_0, window_bounds = array<i64: 8, 256>}, {transform_indices = @transform_1, window_bounds = array<i64: 8, 256>}]} {
    %c0 = arith.constant 0 : index
    %c0_0 = arith.constant 0 : index
    %0 = vector.load %arg1[%c0, %c0_0] : memref<8x256xf32, #tpu.memory_space<vmem>>, vector<8x256xf32>
    %c0_1 = arith.constant 0 : index
    %c0_2 = arith.constant 0 : index
    %1 = vector.load %arg2[%c0_1, %c0_2] : memref<8x256xf32, #tpu.memory_space<vmem>>, vector<8x256xf32>
    tpu.vector_store %arg2[%c0_1, %c0_2], %0 {strides = array<i32>} : memref<8x256xf32, #tpu.memory_space<vmem>>, vector<8x256xf32>,
    return
  }
  func.func @transform_0(%arg0: i32) -> (i32, i32) {
    %c0_i32 = arith.constant 0 : i32
    %c0_i32_0 = arith.constant 0 : i32
    return %arg0, %c0_i32 : i32, i32
  }
  func.func @transform_1(%arg0: i32) -> (i32, i32) {
    %c0_i32 = arith.constant 0 : i32
    %c0_i32_0 = arith.constant 0 : i32
    return %arg0, %c0_i32 : i32, i32
  }
}

</mosaic_0001>

<llo_original>
// kernel: tpu_custom_call.1
$region0: #{tpu_custom_call.1}
  #allocation0 [shape = 'u32[]', space=smem, size = 0x4, offset = 0x4, fixed_abs, tag = 'smem constant byte address 0x4 - core index']
  #allocation1 [shape = 'u32[144,128]{1,0:T(1,128)}', space=vmem, size = 0x12000, scoped, tag = 'internal scratch']
  %s0 = inlined_call_operand.hbm [shape: f32[8,256], index: 0, kind: input, shape index: {}]
  %s1 = inlined_call_operand.hbm [shape: f32[8,256], index: 1, kind: output, shape index: {}]
  %s2 = sld [smem:[#allocation0]]
  $region18: #{tpu_custom_call.1} parent=0
    _
  %s4 = ssub.s32 1, %s2
  %s5 = scalar_select 0, %s4, %s2
  $region1: #{tpu_custom_call.1} parent=0
    #allocation2 [shape = 'u8[8192]{0}', space=vmem, size = 0x2000, scoped, tag = 'input window, operand 0, single buffered']
    #allocation3 [shape = 's32[1]{0}', space=sflag, size = 0x4, scoped, tag = 'scoped memory for tpu_custom_call.1']
    #allocation4 [shape = 's32[1]{0}', space=sflag, size = 0x4, scoped, tag = 'scoped memory for tpu_custom_call.1']
    #allocation5 [shape = 'u8[8192]{0}', space=vmem, size = 0x2000, scoped, tag = 'output window, operand 0, single buffered']
    %6 = vsyncpa [#allocation3], 0
    %7 = vsyncpa [#allocation4], 0
    // Predicated region
    $region2: #{tpu_custom_call.1} parent=1 // pred_check
      _
    $region3: #{tpu_custom_call.1} parent=1 // pred_check_branch
      %9 = sbr.rel (0) target = $region5
    $region4: #{tpu_custom_call.1} parent=1 // pred_region
      %s11 = ssub.s32 256, 256
      %12 = vsyncadd [#allocation3], %s11
      %s14 = sshll.u32 [#allocation2], 4
      %s15 = int_to_ptr.vmem [resolvable:$true] %s14
      %17 = dma.hbm_to_vmem [thread:$0]  %s0, 256, %s15, [#allocation3]
    $region5: #{tpu_custom_call.1} parent=1 // pred_fallthru
      _
    // Predicated region
    $region6: #{tpu_custom_call.1} parent=1 // pred_check
      _
    $region7: #{tpu_custom_call.1} parent=1 // pred_check_branch
      %19 = sbr.rel (0) target = $region9
    $region8: #{tpu_custom_call.1} parent=1 // pred_region
      %20 = dma.done [#allocation3], 256
    $region9: #{tpu_custom_call.1} parent=1 // pred_fallthru
      _
    %v21 = vld [vmem:[#allocation2] sm:$0xff]
    %v22 = vld [vmem:[#allocation2 + $0x8] sm:$0xff]
    %23 = vst [vmem:[#allocation5] sm:$0xff] %v21
    %24 = vst [vmem:[#allocation5 + $0x8] sm:$0xff] %v22
    // Predicated region
    $region10: #{tpu_custom_call.1} parent=1 // pred_check
      _
    $region11: #{tpu_custom_call.1} parent=1 // pred_check_branch
      %26 = sbr.rel (0) target = $region13
    $region12: #{tpu_custom_call.1} parent=1 // pred_region
      %s28 = ssub.s32 256, 256
      %29 = vsyncadd [#allocation4], %s28
      %s31 = sshll.u32 [#allocation5], 4
      %s32 = int_to_ptr.vmem [resolvable:$true] %s31
      %34 = dma.vmem_to_hbm [thread:$0]  %s32, 256, %s1, [#allocation4]
    $region13: #{tpu_custom_call.1} parent=1 // pred_fallthru
      _
    // Predicated region
    $region14: #{tpu_custom_call.1} parent=1 // pred_check
      _
    $region15: #{tpu_custom_call.1} parent=1 // pred_check_branch
      %36 = sbr.rel (0) target = $region17
    $region16: #{tpu_custom_call.1} parent=1 // pred_region
      %37 = dma.done [#allocation4], 256
    $region17: #{tpu_custom_call.1} parent=1 // pred_fallthru
      _
    %38 = vsyncpa [#allocation3], 1
    %39 = vsyncpa [#allocation4], 1

</llo_original>
